<compile_context>
chip_gen: v5e
topology: v5e:2x2
jax: 0.10.0
libtpu: 0.0.40
codegen_flags: <defaults>
</compile_context>

<pallas_src>
import functools

import jax
import jax.numpy as jnp
from jax.experimental import pallas as pl
from jax.experimental.pallas import tpu as pltpu

# TODO(synk): cfg.SOFTMAX is not provided by the source snippet; exposed as a flag.
SOFTMAX = True
BETA = 0.5

_LANE = 128
_TARGET_TILE_BYTES = 2 * 1024 * 1024  # per-input tile; safe on v5e/v6e/v7x scoped VMEM


def _round_up(x, m):
    return (x + m - 1) // m * m


def _loss_kernel(x_ref, t_ref, acc_ref, *, use_softmax: bool, beta: float,
                 rem: int, tile_s: int):
    s = pl.program_id(1)

    # zero the (resident-across-s) per-batch-group partial accumulator
    @pl.when(s == 0)
    def _():
        acc_ref[...] = jnp.zeros_like(acc_ref)

    x = x_ref[...].astype(jnp.float32)  # (Bt, C, TS)
    t = t_ref[...].astype(jnp.float32)  # target.to(input.dtype) -> compute in f32

    if use_softmax:
        # softmax over the channel axis (PyTorch dim=1)
        m = jnp.max(x, axis=1, keepdims=True)
        e = jnp.exp(x - m)
        denom = jnp.sum(e, axis=1, keepdims=True)
        p = e * pl.reciprocal(denom, approx=True)  # EUP vrcp; VALU stays free
    else:
        p = jax.nn.sigmoid(x)

    diff = jnp.abs(p - t)
    loss = jnp.where(diff < beta, (0.5 / beta) * diff * diff, diff - 0.5 * beta)

    if rem != tile_s:
        # zero spatially padded columns (only present in the last spatial block)
        col = jax.lax.broadcasted_iota(jnp.int32, loss.shape, 2)
        is_last = s == pl.num_programs(1) - 1
        loss = jnp.where(jnp.logical_and(is_last, col >= rem), 0.0, loss)

    # Fold batch & channel axes into a lane-dense (1, TS) partial.
    # The expensive full cross-lane reduce is deferred to the wrapper.
    partial = jnp.sum(jnp.sum(loss, axis=0), axis=0, keepdims=True)  # (1, TS)
    acc_ref[...] = acc_ref[...] + partial[None]


def abnormal_smooth_l1_loss(x, target, *, use_softmax: bool = SOFTMAX,
                            beta: float = BETA):
    """x, target: [B, C, H, W]. Returns scalar float32 loss."""
    B, C, H, W = x.shape
    S = H * W
    itemsize = jnp.dtype(x.dtype).itemsize

    # --- spatial tile: multiple of 128, capped so the pipeline fits VMEM ---
    ts_cap = max(_LANE, (_TARGET_TILE_BYTES // (C * itemsize)) // _LANE * _LANE)
    tile_s = min(ts_cap, _round_up(S, _LANE))
    ns = -(-_round_up(S, _LANE) // tile_s)  # number of spatial blocks
    s_pad = ns * tile_s
    rem = S - (ns - 1) * tile_s             # valid columns in the last block

    # --- batch tile: amortize per-step overhead for tiny C*S (divisor of B) ---
    bt = 1
    for cand in range(min(B, 8), 0, -1):
        if B % cand == 0 and cand * C * tile_s * itemsize <= _TARGET_TILE_BYTES:
            bt = cand
            break
    nb = B // bt

    x3 = x.reshape(B, C, S)
    t3 = target.reshape(B, C, S)
    if s_pad != S:
        pad = ((0, 0), (0, 0), (0, s_pad - S))
        x3 = jnp.pad(x3, pad)
        t3 = jnp.pad(t3, pad)

    kernel = functools.partial(
        _loss_kernel, use_softmax=use_softmax, beta=beta, rem=rem, tile_s=tile_s)

    partials = pl.pallas_call(
        kernel,
        out_shape=jax.ShapeDtypeStruct((nb, 1, tile_s), jnp.float32),
        grid_spec=pltpu.PrefetchScalarGridSpec(
            num_scalar_prefetch=0,
            grid=(nb, ns),
            in_specs=[
                pl.BlockSpec((bt, C, tile_s), lambda b, s: (b, 0, s)),
                pl.BlockSpec((bt, C, tile_s), lambda b, s: (b, 0, s)),
            ],
            out_specs=pl.BlockSpec((1, 1, tile_s), lambda b, s: (b, 0, 0)),
        ),
        compiler_params=pltpu.CompilerParams(
            # batch axis parallel (2 TCs on v7x); spatial axis accumulates.
            dimension_semantics=("parallel", "arbitrary"),
            vmem_limit_bytes=32 * 1024 * 1024,
        ),
    )(x3, t3)

    total = B * C * S  # true element count (padding excluded via in-kernel mask)
    return jnp.sum(partials) * jnp.float32(1.0 / total)


def _reference(x, target, *, use_softmax: bool = SOFTMAX, beta: float = BETA):
    t = target.astype(x.dtype)
    if use_softmax:
        p = jax.nn.softmax(x, axis=1)
    else:
        p = jax.nn.sigmoid(x)
    diff = jnp.abs(p - t)
    loss = jnp.where(diff < beta, 0.5 * diff * diff / beta, diff - 0.5 * beta)
    return jnp.mean(loss)


if __name__ == "__main__":
    key = jax.random.PRNGKey(0)

    # Case 1: aligned shapes (B=2, C=4, 16x16)
    k1, k2, k3, k4 = jax.random.split(key, 4)
    x_a = jax.random.normal(k1, (2, 4, 16, 16), dtype=jnp.float32)
    t_a = jax.random.uniform(k2, (2, 4, 16, 16), dtype=jnp.float32)

    # Case 2: unaligned shapes (exercises spatial padding + masking + Bt>1)
    x_b = jax.random.normal(k3, (3, 5, 9, 11), dtype=jnp.float32)
    t_b = jax.random.uniform(k4, (3, 5, 9, 11), dtype=jnp.float32)

    for (xx, tt) in ((x_a, t_a), (x_b, t_b)):
        for mode in (True, False):
            got = jax.block_until_ready(
                abnormal_smooth_l1_loss(xx, tt, use_softmax=mode))
            ref = jax.block_until_ready(_reference(xx, tt, use_softmax=mode))
            # tolerance accommodates pl.reciprocal(approx=True) in the softmax path
            assert jnp.allclose(got, ref, atol=2e-4, rtol=2e-4), (mode, got, ref)

    print("KERNEL_OK")
</pallas_src>

<mosaic_0001>
module attributes {stable_mosaic.version = 11 : i64} {
  func.func @_loss_kernel(%arg0: i32, %arg1: i32, %arg2: memref<2x4x256xf32, #tpu.memory_space<vmem>>, %arg3: memref<2x4x256xf32, #tpu.memory_space<vmem>>, %arg4: memref<1x1x256xf32, #tpu.memory_space<vmem>>) attributes {dimension_semantics = [#tpu.dimension_semantics<parallel>, #tpu.dimension_semantics<arbitrary>], iteration_bounds = array<i64: 1, 1>, scalar_prefetch = 0 : i64, scratch_operands = 0 : i64, tpu.core_type = #tpu.core_type<tc>, window_params = [{transform_indices = @transform_0, window_bounds = array<i64: 2, 4, 256>}, {transform_indices = @transform_1, window_bounds = array<i64: 2, 4, 256>}, {transform_indices = @transform_2, window_bounds = array<i64: 1, 1, 256>}]} {
    %c0_i32 = arith.constant 0 : i32
    %0 = arith.cmpi eq, %arg1, %c0_i32 : i32
    %1 = arith.extui %0 : i1 to i32
    %c0_i32_0 = arith.constant 0 : i32
    %2 = arith.cmpi ne, %1, %c0_i32_0 : i32
    scf.if %2 {
      %cst_18 = arith.constant 0.000000e+00 : f32
      %32 = vector.broadcast %cst_18 : f32 to vector<1x1x256xf32>
      %c0_19 = arith.constant 0 : index
      %c0_20 = arith.constant 0 : index
      %c0_21 = arith.constant 0 : index
      %33 = vector.load %arg4[%c0_19, %c0_20, %c0_21] : memref<1x1x256xf32, #tpu.memory_space<vmem>>, vector<1x1x256xf32>
      tpu.vector_store %arg4[%c0_19, %c0_20, %c0_21], %32 {strides = array<i32>} : memref<1x1x256xf32, #tpu.memory_space<vmem>>, vector<1x1x256xf32>,
    } else {
    }
    %c0 = arith.constant 0 : index
    %c0_1 = arith.constant 0 : index
    %c0_2 = arith.constant 0 : index
    %3 = vector.load %arg2[%c0, %c0_1, %c0_2] : memref<2x4x256xf32, #tpu.memory_space<vmem>>, vector<2x4x256xf32>
    %c0_3 = arith.constant 0 : index
    %c0_4 = arith.constant 0 : index
    %c0_5 = arith.constant 0 : index
    %4 = vector.load %arg3[%c0_3, %c0_4, %c0_5] : memref<2x4x256xf32, #tpu.memory_space<vmem>>, vector<2x4x256xf32>
    %cst = arith.constant dense<0xFF800000> : vector<2x256xf32>
    %5 = vector.multi_reduction <maximumf>, %3, %cst [1] : vector<2x4x256xf32> to vector<2x256xf32>
    %6 = vector.shape_cast %5 : vector<2x256xf32> to vector<2x1x256xf32>
    %7 = vector.broadcast %6 : vector<2x1x256xf32> to vector<2x4x256xf32>
    %8 = arith.subf %3, %7 : vector<2x4x256xf32>
    %9 = math.exp %8 : vector<2x4x256xf32>
    %cst_6 = arith.constant dense<0.000000e+00> : vector<2x256xf32>
    %10 = vector.multi_reduction <add>, %9, %cst_6 [1] : vector<2x4x256xf32> to vector<2x256xf32>
    %11 = vector.shape_cast %10 : vector<2x256xf32> to vector<2x1x256xf32>
    %12 = tpu.reciprocal %11 {approx = true} : vector<2x1x256xf32> -> vector<2x1x256xf32>
    %13 = vector.broadcast %12 : vector<2x1x256xf32> to vector<2x4x256xf32>
    %14 = arith.mulf %9, %13 : vector<2x4x256xf32>
    %15 = arith.subf %14, %4 : vector<2x4x256xf32>
    %16 = math.absf %15 : vector<2x4x256xf32>
    %cst_7 = arith.constant 5.000000e-01 : f32
    %17 = vector.broadcast %cst_7 : f32 to vector<2x4x256xf32>
    %18 = arith.cmpf olt, %16, %17 : vector<2x4x256xf32>
    %cst_8 = arith.constant 1.000000e+00 : f32
    %19 = vector.broadcast %cst_8 : f32 to vector<2x4x256xf32>
    %20 = arith.mulf %19, %16 : vector<2x4x256xf32>
    %21 = arith.mulf %20, %16 : vector<2x4x256xf32>
    %cst_9 = arith.constant 2.500000e-01 : f32
    %22 = vector.broadcast %cst_9 : f32 to vector<2x4x256xf32>
    %23 = arith.subf %16, %22 : vector<2x4x256xf32>
    %24 = arith.select %18, %21, %23 : vector<2x4x256xi1>, vector<2x4x256xf32>
    %cst_10 = arith.constant dense<0.000000e+00> : vector<4x256xf32>
    %25 = vector.multi_reduction <add>, %24, %cst_10 [0] : vector<2x4x256xf32> to vector<4x256xf32>
    %cst_11 = arith.constant dense<0.000000e+00> : vector<256xf32>
    %26 = vector.multi_reduction <add>, %25, %cst_11 [0] : vector<4x256xf32> to vector<256xf32>
    %27 = vector.shape_cast %26 : vector<256xf32> to vector<1x256xf32>
    %c0_12 = arith.constant 0 : index
    %c0_13 = arith.constant 0 : index
    %c0_14 = arith.constant 0 : index
    %28 = vector.load %arg4[%c0_12, %c0_13, %c0_14] : memref<1x1x256xf32, #tpu.memory_space<vmem>>, vector<1x1x256xf32>
    %29 = vector.shape_cast %27 : vector<1x256xf32> to vector<1x1x256xf32>
    %30 = arith.addf %28, %29 : vector<1x1x256xf32>
    %c0_15 = arith.constant 0 : index
    %c0_16 = arith.constant 0 : index
    %c0_17 = arith.constant 0 : index
    %31 = vector.load %arg4[%c0_15, %c0_16, %c0_17] : memref<1x1x256xf32, #tpu.memory_space<vmem>>, vector<1x1x256xf32>
    tpu.vector_store %arg4[%c0_15, %c0_16, %c0_17], %30 {strides = array<i32>} : memref<1x1x256xf32, #tpu.memory_space<vmem>>, vector<1x1x256xf32>,
    return
  }
  func.func @transform_0(%arg0: i32, %arg1: i32) -> (i32, i32, i32) {
    %c0_i32 = arith.constant 0 : i32
    %c0_i32_0 = arith.constant 0 : i32
    return %arg0, %c0_i32, %arg1 : i32, i32, i32
  }
  func.func @transform_1(%arg0: i32, %arg1: i32) -> (i32, i32, i32) {
    %c0_i32 = arith.constant 0 : i32
    %c0_i32_0 = arith.constant 0 : i32
    return %arg0, %c0_i32, %arg1 : i32, i32, i32
  }
  func.func @transform_2(%arg0: i32, %arg1: i32) -> (i32, i32, i32) {
    %c0_i32 = arith.constant 0 : i32
    %c0_i32_0 = arith.constant 0 : i32
    %c0_i32_1 = arith.constant 0 : i32
    return %arg0, %c0_i32, %c0_i32_0 : i32, i32, i32
  }
}

</mosaic_0001>

<llo_original>
// kernel: tpu_custom_call.1
$region0: #{tpu_custom_call.1}
  #allocation0 [shape = 'u32[]', space=smem, size = 0x4, offset = 0x4, fixed_abs, tag = 'smem constant byte address 0x4 - core index']
  #allocation1 [shape = 'u32[72,128]{1,0:T(1,128)}', space=vmem, size = 0x9000, scoped, tag = 'internal scratch']
  %s0 = inlined_call_operand.hbm [shape: f32[2,4,256], index: 0, kind: input, shape index: {}]
  %s1 = inlined_call_operand.hbm [shape: f32[2,4,256], index: 1, kind: input, shape index: {}]
  %s2 = inlined_call_operand.hbm [shape: f32[1,1,256], index: 2, kind: output, shape index: {}]
  %s3 = sld [smem:[#allocation0]]
  $region30: #{tpu_custom_call.1} parent=0
    _
  %s5 = ssub.s32 1, %s3
  %s6 = scalar_select 0, %s5, %s3
  $region1: #{tpu_custom_call.1} parent=0
    #allocation2 [shape = 'u8[8192]{0}', space=vmem, size = 0x2000, scoped, tag = 'input window, operand 0, single buffered']
    #allocation3 [shape = 's32[1]{0}', space=sflag, size = 0x4, scoped, tag = 'scoped memory for tpu_custom_call.1']
    #allocation4 [shape = 's32[1]{0}', space=sflag, size = 0x4, scoped, tag = 'scoped memory for tpu_custom_call.1']
    #allocation5 [shape = 'u8[8192]{0}', space=vmem, size = 0x2000, scoped, tag = 'input window, operand 1, single buffered']
    #allocation6 [shape = 's32[1]{0}', space=sflag, size = 0x4, scoped, tag = 'scoped memory for tpu_custom_call.1']
    #allocation7 [shape = 'u8[1024]{0}', space=vmem, size = 0x400, scoped, tag = 'output window, operand 0, single buffered']
    %7 = vsyncpa [#allocation3], 0
    %8 = vsyncpa [#allocation6], 0
    %9 = vsyncpa [#allocation4], 0
    // Predicated region
    $region2: #{tpu_custom_call.1} parent=1 // pred_check
      _
    $region3: #{tpu_custom_call.1} parent=1 // pred_check_branch
      %11 = sbr.rel (0) target = $region5
    $region4: #{tpu_custom_call.1} parent=1 // pred_region
      %13 = vsyncadd [#allocation3], 0
      %s14 = sshll.u32 %s0, 4
      %s15 = int_to_ptr.hbm [resolvable:$true] %s14
      %s16 = sshll.u32 [#allocation2], 4
      %s17 = int_to_ptr.vmem [resolvable:$true] %s16
      %22 = dma.hbm_to_vmem [thread:$0]  %s15, 256, %s17, [#allocation3], 128, 128, 8
    $region5: #{tpu_custom_call.1} parent=1 // pred_fallthru
      _
    // Predicated region
    $region6: #{tpu_custom_call.1} parent=1 // pred_check
      _
    $region7: #{tpu_custom_call.1} parent=1 // pred_check_branch
      %24 = sbr.rel (0) target = $region9
    $region8: #{tpu_custom_call.1} parent=1 // pred_region
      %26 = vsyncadd [#allocation6], 0
      %s27 = sshll.u32 %s1, 4
      %s28 = int_to_ptr.hbm [resolvable:$true] %s27
      %s29 = sshll.u32 [#allocation5], 4
      %s30 = int_to_ptr.vmem [resolvable:$true] %s29
      %35 = dma.hbm_to_vmem [thread:$0]  %s28, 256, %s30, [#allocation6], 128, 128, 8
    $region9: #{tpu_custom_call.1} parent=1 // pred_fallthru
      _
    // Predicated region
    $region10: #{tpu_custom_call.1} parent=1 // pred_check
      _
    $region11: #{tpu_custom_call.1} parent=1 // pred_check_branch
      %37 = sbr.rel (0) target = $region13
    $region12: #{tpu_custom_call.1} parent=1 // pred_region
      %39 = dma.done [#allocation3], 256
    $region13: #{tpu_custom_call.1} parent=1 // pred_fallthru
      _
    // Predicated region
    $region14: #{tpu_custom_call.1} parent=1 // pred_check
      _
    $region15: #{tpu_custom_call.1} parent=1 // pred_check_branch
      %41 = sbr.rel (0) target = $region17
    $region16: #{tpu_custom_call.1} parent=1 // pred_region
      %43 = dma.done [#allocation6], 256
    $region17: #{tpu_custom_call.1} parent=1 // pred_fallthru
      _
    %p44 = scmp.eq.s32.totalorder 0, 0
    // Predicated region
    $region18: #{tpu_custom_call.1} parent=1 // pred_check
      %p45 = pneg %p44
    $region19: #{tpu_custom_call.1} parent=1 // pred_check_branch
      %47 = sbr.rel (%p45) target = $region21
    $region20: #{tpu_custom_call.1} parent=1 // pred_region
      %v48 = vlaneseq
      %vm49 = vcmp.ge.s32.totalorder %v48, 0
      %vm50 = vcmp.lt.s32.totalorder %v48, 256
      %vm51 = vmand %vm49, %vm50
      %52 = vst.msk [vmem:[#allocation7] sm:$0x3] %vm51, 0.0
    $region21: #{tpu_custom_call.1} parent=1 // pred_fallthru
      _
    %v53 = vld [vmem:[#allocation2] sm:$0xff]
    %v54 = vld [vmem:[#allocation2 + $0x8] sm:$0xff]
    %v55 = vld [vmem:[#allocation5] sm:$0xff]
    %v56 = vld [vmem:[#allocation5 + $0x8] sm:$0xff]
    %59 = vst [vmem:[#allocation1] ss:$2 sm:$0xff] %v53
    %v60 = vld.sshfl [vmem:[#allocation1] sm:$0xff pattern:$0x75316420]
    %v61 = vld.sshfl [vmem:[#allocation1 + $0x8] sm:$0xff pattern:$0x75316420]
    %s62 = scalar_lea.vmem [#allocation1], 16
    %63 = vst [vmem:[%s62] ss:$2 sm:$0xff] %v54
    %v64 = vld.sshfl [vmem:[#allocation1 + $0x10] sm:$0xff pattern:$0x75316420]
    %v65 = vld.sshfl [vmem:[#allocation1 + $0x18] sm:$0xff pattern:$0x75316420]
    %vm70 = vcmask 1043456
    %v71 = vsel %vm70, %v60, -inf
    %v72 = vrot.slane %v71, 4
    %v73 = vmax.f32 %v71, %v72
    %v74 = vrot.slane %v73, 2
    %v75 = vmax.f32 %v73, %v74
    %v76 = vrot.slane %v75, 1
    %v77 = vmax.f32 %v75, %v76
    %v78 = vsel %vm70, %v61, -inf
    %v79 = vrot.slane %v78, 4
    %v80 = vmax.f32 %v78, %v79
    %v81 = vrot.slane %v80, 2
    %v82 = vmax.f32 %v80, %v81
    %v83 = vrot.slane %v82, 1
    %v84 = vmax.f32 %v82, %v83
    %v85 = vsel %vm70, %v64, -inf
    %v86 = vrot.slane %v85, 4
    %v87 = vmax.f32 %v85, %v86
    %v88 = vrot.slane %v87, 2
    %v89 = vmax.f32 %v87, %v88
    %v90 = vrot.slane %v89, 1
    %v91 = vmax.f32 %v89, %v90
    %v92 = vsel %vm70, %v65, -inf
    %v93 = vrot.slane %v92, 4
    %v94 = vmax.f32 %v92, %v93
    %v95 = vrot.slane %v94, 2
    %v96 = vmax.f32 %v94, %v95
    %v97 = vrot.slane %v96, 1
    %v98 = vmax.f32 %v96, %v97
    %v103 = vrot.slane %v84, 4
    %v104 = vrot.slane %v98, 4
    %v105 = vsel %vm70, %v77, %v103
    %v106 = vsel %vm70, %v91, %v104
    %v109 = vsub.f32 %v53, %v105
    %v110 = vsub.f32 %v54, %v106
    %v111 = vmul.f32 %v109, 1.442695
    %v112 = vpow.pop %v111
    %v113 = vmul.f32 %v110, 1.442695
    %v114 = vpow.pop %v113
    %117 = vst [vmem:[#allocation1] ss:$2 sm:$0xff] %v112
    %v118 = vld.sshfl [vmem:[#allocation1] sm:$0xff pattern:$0x75316420]
    %v119 = vld.sshfl [vmem:[#allocation1 + $0x8] sm:$0xff pattern:$0x75316420]
    %s120 = scalar_lea.vmem [#allocation1], 16
    %121 = vst [vmem:[%s120] ss:$2 sm:$0xff] %v114
    %v122 = vld.sshfl [vmem:[#allocation1 + $0x10] sm:$0xff pattern:$0x75316420]
    %v123 = vld.sshfl [vmem:[#allocation1 + $0x18] sm:$0xff pattern:$0x75316420]
    %v128 = vsel %vm70, %v118, 0.0
    %v129 = vrot.slane %v128, 4
    %v130 = vadd.f32 %v128, %v129
    %v131 = vrot.slane %v130, 2
    %v132 = vadd.f32 %v130, %v131
    %v133 = vrot.slane %v132, 1
    %v134 = vadd.f32 %v132, %v133
    %v135 = vsel %vm70, %v119, 0.0
    %v136 = vrot.slane %v135, 4
    %v137 = vadd.f32 %v135, %v136
    %v138 = vrot.slane %v137, 2
    %v139 = vadd.f32 %v137, %v138
    %v140 = vrot.slane %v139, 1
    %v141 = vadd.f32 %v139, %v140
    %v142 = vsel %vm70, %v122, 0.0
    %v143 = vrot.slane %v142, 4
    %v144 = vadd.f32 %v142, %v143
    %v145 = vrot.slane %v144, 2
    %v146 = vadd.f32 %v144, %v145
    %v147 = vrot.slane %v146, 1
    %v148 = vadd.f32 %v146, %v147
    %v149 = vsel %vm70, %v123, 0.0
    %v150 = vrot.slane %v149, 4
    %v151 = vadd.f32 %v149, %v150
    %v152 = vrot.slane %v151, 2
    %v153 = vadd.f32 %v151, %v152
    %v154 = vrot.slane %v153, 1
    %v155 = vadd.f32 %v153, %v154
    %v156 = vrcp.pop %v134
    %v157 = vrcp.pop %v141
    %v158 = vrcp.pop %v148
    %v159 = vrcp.pop %v155
    %v164 = vrot.slane %v157, 4
    %v165 = vrot.slane %v159, 4
    %v166 = vsel %vm70, %v156, %v164
    %v167 = vsel %vm70, %v158, %v165
    %v170 = vmul.f32 %v112, %v166
    %v171 = vmul.f32 %v114, %v167
    %v172 = vsub.f32 %v170, %v55
    %v173 = vsub.f32 %v171, %v56
    %v174 = vand.u32 2147483647, %v172
    %v175 = vand.u32 2147483647, %v173
    %vm176 = vcmp.lt.f32.partialorder %v174, 0.5
    %vm177 = vcmp.lt.f32.partialorder %v175, 0.5
    %v178 = vmul.f32 %v174, %v174
    %v179 = vmul.f32 %v175, %v175
    %v180 = vsub.f32 %v174, 0.25
    %v181 = vsub.f32 %v175, 0.25
    %v182 = vsel %vm176, %v178, %v180
    %v183 = vsel %vm177, %v179, %v181
    %186 = vst [vmem:[#allocation1] ss:$2 sm:$0xff] %v182
    %v187 = vld.sshfl [vmem:[#allocation1] sm:$0xff pattern:$0x75316420]
    %v188 = vld.sshfl [vmem:[#allocation1 + $0x8] sm:$0xff pattern:$0x75316420]
    %s189 = scalar_lea.vmem [#allocation1], 16
    %190 = vst [vmem:[%s189] ss:$2 sm:$0xff] %v183
    %v191 = vld.sshfl [vmem:[#allocation1 + $0x10] sm:$0xff pattern:$0x75316420]
    %v192 = vld.sshfl [vmem:[#allocation1 + $0x18] sm:$0xff pattern:$0x75316420]
    %v197 = vsel %vm70, %v187, 0.0
    %v198 = vsel %vm70, %v191, 0.0
    %v199 = vadd.f32 %v197, %v198
    %v200 = vsel %vm70, %v188, 0.0
    %v201 = vsel %vm70, %v192, 0.0
    %v202 = vadd.f32 %v200, %v201
    %v203 = vsel %vm70, %v199, 0.0
    %v204 = vrot.slane %v203, 4
    %v205 = vadd.f32 %v203, %v204
    %v206 = vrot.slane %v205, 2
    %v207 = vadd.f32 %v205, %v206
    %v208 = vrot.slane %v207, 1
    %v209 = vadd.f32 %v207, %v208
    %v210 = vsel %vm70, %v202, 0.0
    %v211 = vrot.slane %v210, 4
    %v212 = vadd.f32 %v210, %v211
    %v213 = vrot.slane %v212, 2
    %v214 = vadd.f32 %v212, %v213
    %v215 = vrot.slane %v214, 1
    %v216 = vadd.f32 %v214, %v215
    %v217 = vld [vmem:[#allocation7] sm:$0x3]
    %v220 = vrot.slane %v216, 7
    %vm221 = vcmask 1040384
    %v222 = vsel %vm221, %v209, %v220
    %v224 = vadd.f32 %v217, %v222
    %v225 = vlaneseq
    %vm226 = vcmp.ge.s32.totalorder %v225, 0
    %vm227 = vcmp.lt.s32.totalorder %v225, 256
    %vm228 = vmand %vm226, %vm227
    %229 = vst.msk [vmem:[#allocation7] sm:$0x3] %vm228, %v224
    // Predicated region
    $region22: #{tpu_custom_call.1} parent=1 // pred_check
      _
    $region23: #{tpu_custom_call.1} parent=1 // pred_check_branch
      %231 = sbr.rel (0) target = $region25
    $region24: #{tpu_custom_call.1} parent=1 // pred_region
      %233 = vsyncadd [#allocation4], 0
      %s235 = sshll.u32 [#allocation7], 4
      %s236 = int_to_ptr.vmem [resolvable:$true] %s235
      %s237 = sshll.u32 %s2, 4
      %s238 = int_to_ptr.hbm [resolvable:$true] %s237
      %240 = dma.vmem_to_hbm [thread:$0]  %s236, 32, %s238, [#allocation4]
    $region25: #{tpu_custom_call.1} parent=1 // pred_fallthru
      _
    // Predicated region
    $region26: #{tpu_custom_call.1} parent=1 // pred_check
      _
    $region27: #{tpu_custom_call.1} parent=1 // pred_check_branch
      %242 = sbr.rel (0) target = $region29
    $region28: #{tpu_custom_call.1} parent=1 // pred_region
      %244 = dma.done [#allocation4], 32
    $region29: #{tpu_custom_call.1} parent=1 // pred_fallthru
      _
    %245 = vsyncpa [#allocation3], 1
    %246 = vsyncpa [#allocation6], 1
    %247 = vsyncpa [#allocation4], 1

</llo_original>
